<compile_context>
chip_gen: v6e
topology: v6e:2x2x1
jax: 0.10.0
libtpu: 0.0.40
codegen_flags: <defaults>
</compile_context>

<pallas_src>
import functools

import jax
import jax.numpy as jnp
import numpy as np
from jax.experimental import pallas as pl
from jax.experimental.pallas import tpu as pltpu


def distil_kernel(x_ref, w_ref, g_ref, beta_ref, o_ref, *, eps):
    # x_ref:    (B, L, Cin)      input features, f32 (channels on lanes, seq on sublanes)
    # w_ref:    (Cin, 3*Cout)    conv weight, bf16; column block k holds W[:, :, k]^T
    # g_ref:    (1, Cout)        batchnorm gamma
    # beta_ref: (1, Cout)        batchnorm beta
    # o_ref:    (B, L_out, Cout) output
    B, L, Cin = x_ref.shape
    Cout = g_ref.shape[-1]
    L_out = o_ref.shape[1]

    # --- circular Conv1d(k=3, pad=1): one bf16 MXU matmul + 2 circular shifts ---------
    # z[:, :, k*Cout + o] = sum_i x[:, :, i] * W[o, i, k]
    # (B*L and L are multiples of 8 at the demo shapes, so the reshapes are no-op views.)
    x2 = x_ref[...].reshape(B * L, Cin).astype(jnp.bfloat16)
    z = jnp.dot(x2, w_ref[...], preferred_element_type=jnp.float32)     # (B*L, 3*Cout)
    z = z.reshape(B, L, 3 * Cout)
    z_km1 = z[:, :, 0 * Cout:1 * Cout]   # tap k=0 -> reads x[l-1]
    z_k0 = z[:, :, 1 * Cout:2 * Cout]    # tap k=1 -> reads x[l]
    z_kp1 = z[:, :, 2 * Cout:3 * Cout]   # tap k=2 -> reads x[l+1]
    # out[l] = z_km1[(l-1) % L] + z_k0[l] + z_kp1[(l+1) % L]
    y = (jnp.concatenate([z_km1[:, L - 1:L, :], z_km1[:, :L - 1, :]], axis=1)
         + z_k0
         + jnp.concatenate([z_kp1[:, 1:, :], z_kp1[:, 0:1, :]], axis=1))
    # conv bias intentionally omitted: a per-channel constant cancels exactly in
    # training-mode BatchNorm (subtracted with the batch mean; variance unaffected).

    # --- BatchNorm1d: fresh module => training mode => biased batch stats over (B, L).
    # One pass: per-channel sum and sum-of-squares, var = E[y^2] - mean^2.
    # TODO(synk): running-stat (momentum) buffer updates are a training side effect
    #             with no effect on the returned tensor; not reproduced here.
    inv_n = 1.0 / (B * L)
    mean = jnp.sum(y, axis=(0, 1), keepdims=True) * inv_n                # (1, 1, Cout)
    var = jnp.maximum(
        jnp.sum(y * y, axis=(0, 1), keepdims=True) * inv_n - mean * mean, 0.0)
    scale = g_ref[...].reshape(1, 1, Cout) * jax.lax.rsqrt(var + eps)
    shift = beta_ref[...].reshape(1, 1, Cout) - mean * scale
    y = y * scale + shift

    # --- ELU (alpha = 1); clamp the exp argument so the discarded branch never infs --
    y = jnp.where(y > 0, y, jnp.exp(jnp.minimum(y, 0.0)) - 1.0)

    # --- MaxPool1d(kernel=3, stride=2, pad=1), pad value -inf -------------------------
    # v[l] = max(y[l-1], y[l])   (y[-1] := -inf);   out[j] = max(v[2j], v[2j+1])
    neg = jnp.full((B, 1, Cout), -jnp.inf, jnp.float32)
    v = jnp.maximum(jnp.concatenate([neg, y[:, :L - 1, :]], axis=1), y)
    even = jnp.concatenate([v[:, 2 * j:2 * j + 1, :] for j in range(L_out)], axis=1)
    odd = jnp.concatenate(
        [v[:, 2 * j + 1:2 * j + 2, :] if 2 * j + 1 < L else neg for j in range(L_out)],
        axis=1)
    pooled = jnp.maximum(even, odd)                                      # (B, L_out, Cout)

    # single dense full-block store (replaces the per-row masked-store loop)
    o_ref[...] = pooled.astype(o_ref.dtype)


def distil_forward(x, w_conv, b_conv, gamma, beta, *, eps=1e-5):
    """x: (B, L, Cin) float32; w_conv: (Cout, Cin, 3) in PyTorch Conv1d layout."""
    B, L, Cin = x.shape
    Cout = w_conv.shape[0]
    L_out = (L - 1) // 2 + 1

    # (Cout, Cin, 3) -> (Cin, 3, Cout) -> (Cin, 3*Cout): w_mat[i, k*Cout + o] = W[o, i, k]
    # bf16 weights feed the MXU natively on v5e/v6e/v7x.
    w_mat = jnp.transpose(w_conv, (1, 2, 0)).reshape(Cin, 3 * Cout).astype(jnp.bfloat16)
    g2 = gamma.reshape(1, Cout).astype(jnp.float32)
    be2 = beta.reshape(1, Cout).astype(jnp.float32)
    # b_conv is not passed to the kernel: a per-channel constant bias is mathematically
    # cancelled by the training-mode BatchNorm that immediately follows the conv.
    del b_conv

    kernel = functools.partial(distil_kernel, eps=eps)
    return pl.pallas_call(
        kernel,
        out_shape=jax.ShapeDtypeStruct((B, L_out, Cout), x.dtype),
        grid=(1,),
        in_specs=[
            pl.BlockSpec((B, L, Cin), lambda i: (0, 0, 0)),
            pl.BlockSpec((Cin, 3 * Cout), lambda i: (0, 0)),
            pl.BlockSpec((1, Cout), lambda i: (0, 0)),
            pl.BlockSpec((1, Cout), lambda i: (0, 0)),
        ],
        out_specs=pl.BlockSpec((B, L_out, Cout), lambda i: (0, 0, 0)),
        compiler_params=pltpu.CompilerParams(
            dimension_semantics=("arbitrary",),
            vmem_limit_bytes=64 * 1024 * 1024,
        ),
    )(x, w_mat, g2, be2)


def _ref_forward(x, w, b, gamma, beta, eps=1e-5):
    """NumPy reference mirroring the PyTorch forward (training-mode BatchNorm, with bias)."""
    x = np.asarray(x, np.float64)
    w = np.asarray(w, np.float64)
    b = np.asarray(b, np.float64)
    gamma = np.asarray(gamma, np.float64)
    beta = np.asarray(beta, np.float64)
    B, L, Cin = x.shape
    Cout = w.shape[0]
    xt = np.transpose(x, (0, 2, 1))                                   # (B, Cin, L)
    xp = np.concatenate([xt[:, :, -1:], xt, xt[:, :, :1]], axis=2)    # circular pad 1
    y = np.zeros((B, Cout, L), np.float64)
    for l in range(L):
        y[:, :, l] = np.einsum('bik,oik->bo', xp[:, :, l:l + 3], w) + b
    mean = y.mean(axis=(0, 2), keepdims=True)
    var = y.var(axis=(0, 2), keepdims=True)                           # biased
    y = (y - mean) / np.sqrt(var + eps)
    y = y * gamma.reshape(1, -1, 1) + beta.reshape(1, -1, 1)
    y = np.where(y > 0, y, np.exp(y) - 1.0)
    pad = np.full((B, Cout, 1), -np.inf)
    yp = np.concatenate([pad, y, pad], axis=2)
    L_out = (L - 1) // 2 + 1
    out = np.zeros((B, Cout, L_out), np.float64)
    for j in range(L_out):
        out[:, :, j] = yp[:, :, 2 * j:2 * j + 3].max(axis=2)
    return np.transpose(out, (0, 2, 1)).astype(np.float32)


if __name__ == "__main__":
    B, L, Cin, Cout = 2, 16, 8, 8
    key = jax.random.PRNGKey(0)
    k1, k2, k3 = jax.random.split(key, 3)

    x = jax.random.normal(k1, (B, L, Cin), jnp.float32)

    # Deterministic parameter init (shapes from Conv1d(Cin, Cout, 3) / BatchNorm1d(Cout))
    fan_in = Cin * 3
    bound = 1.0 / np.sqrt(fan_in)
    w_conv = jax.random.uniform(k2, (Cout, Cin, 3), jnp.float32, -bound, bound)
    b_conv = jax.random.uniform(k3, (Cout,), jnp.float32, -bound, bound)
    gamma = jnp.ones((Cout,), jnp.float32)   # BatchNorm default affine init
    beta = jnp.zeros((Cout,), jnp.float32)

    out = distil_forward(x, w_conv, b_conv, gamma, beta)
    out = jax.block_until_ready(out)

    L_out = (L - 1) // 2 + 1
    assert out.shape == (B, L_out, Cout), out.shape

    # Reference in float64 with the full f32 math (incl. conv bias).  The kernel uses
    # the native bf16 MXU path for the conv matmul (per perf guidance); BatchNorm
    # renormalizes afterwards, leaving ~1e-2-level deviations, so compare loosely.
    ref = _ref_forward(x, w_conv, b_conv, gamma, beta)
    np.testing.assert_allclose(np.asarray(out), ref, rtol=5e-2, atol=5e-2)

    print("KERNEL_OK")
</pallas_src>

<mosaic_0001>
module attributes {stable_mosaic.version = 11 : i64} {
  func.func @distil_kernel(%arg0: i32, %arg1: memref<2x16x8xf32, #tpu.memory_space<vmem>>, %arg2: memref<8x24xbf16, #tpu.memory_space<vmem>>, %arg3: memref<1x8xf32, #tpu.memory_space<vmem>>, %arg4: memref<1x8xf32, #tpu.memory_space<vmem>>, %arg5: memref<2x8x8xf32, #tpu.memory_space<vmem>>) attributes {dimension_semantics = [#tpu.dimension_semantics<arbitrary>], iteration_bounds = array<i64: 1>, scalar_prefetch = 0 : i64, scratch_operands = 0 : i64, tpu.core_type = #tpu.core_type<tc>, window_params = [{pipeline_mode = #tpu.pipeline_mode<synchronous>, transform_indices = @transform_0, window_bounds = array<i64: 2, 16, 8>}, {pipeline_mode = #tpu.pipeline_mode<synchronous>, transform_indices = @transform_1, window_bounds = array<i64: 8, 24>}, {pipeline_mode = #tpu.pipeline_mode<synchronous>, transform_indices = @transform_2, window_bounds = array<i64: 1, 8>}, {pipeline_mode = #tpu.pipeline_mode<synchronous>, transform_indices = @transform_3, window_bounds = array<i64: 1, 8>}, {pipeline_mode = #tpu.pipeline_mode<synchronous>, transform_indices = @transform_4, window_bounds = array<i64: 2, 8, 8>}]} {
    %c0 = arith.constant 0 : index
    %c0_0 = arith.constant 0 : index
    %c0_1 = arith.constant 0 : index
    %0 = vector.load %arg1[%c0, %c0_0, %c0_1] : memref<2x16x8xf32, #tpu.memory_space<vmem>>, vector<2x16x8xf32>
    %1 = vector.shape_cast %0 : vector<2x16x8xf32> to vector<32x8xf32>
    %2 = arith.truncf %1 : vector<32x8xf32> to vector<32x8xbf16>
    %c0_2 = arith.constant 0 : index
    %c0_3 = arith.constant 0 : index
    %3 = vector.load %arg2[%c0_2, %c0_3] : memref<8x24xbf16, #tpu.memory_space<vmem>>, vector<8x24xbf16>
    %cst = arith.constant dense<0.000000e+00> : vector<32x24xf32>
    %4 = tpu.matmul %2, %3, %cst {dimension_numbers = #tpu.dot_dimension_numbers<[1], [0], [0], [1], [0, 0, 1, 1], [], []>} : vector<32x8xbf16>, vector<8x24xbf16>, vector<32x24xf32> -> vector<32x24xf32>
    %5 = vector.shape_cast %4 : vector<32x24xf32> to vector<2x16x24xf32>
    %6 = vector.extract_strided_slice %5 {offsets = [0, 0, 0], sizes = [2, 16, 8], strides = [1, 1, 1]} : vector<2x16x24xf32> to vector<2x16x8xf32>
    %7 = vector.extract_strided_slice %5 {offsets = [0, 0, 8], sizes = [2, 16, 8], strides = [1, 1, 1]} : vector<2x16x24xf32> to vector<2x16x8xf32>
    %8 = vector.extract_strided_slice %5 {offsets = [0, 0, 16], sizes = [2, 16, 8], strides = [1, 1, 1]} : vector<2x16x24xf32> to vector<2x16x8xf32>
    %9 = vector.extract_strided_slice %6 {offsets = [0, 15, 0], sizes = [2, 1, 8], strides = [1, 1, 1]} : vector<2x16x8xf32> to vector<2x1x8xf32>
    %10 = vector.extract_strided_slice %6 {offsets = [0, 0, 0], sizes = [2, 15, 8], strides = [1, 1, 1]} : vector<2x16x8xf32> to vector<2x15x8xf32>
    %11 = tpu.concatenate %9, %10 in 1 : vector<2x1x8xf32>, vector<2x15x8xf32> -> vector<2x16x8xf32>
    %12 = arith.addf %11, %7 : vector<2x16x8xf32>
    %13 = vector.extract_strided_slice %8 {offsets = [0, 1, 0], sizes = [2, 15, 8], strides = [1, 1, 1]} : vector<2x16x8xf32> to vector<2x15x8xf32>
    %14 = vector.extract_strided_slice %8 {offsets = [0, 0, 0], sizes = [2, 1, 8], strides = [1, 1, 1]} : vector<2x16x8xf32> to vector<2x1x8xf32>
    %15 = tpu.concatenate %13, %14 in 1 : vector<2x15x8xf32>, vector<2x1x8xf32> -> vector<2x16x8xf32>
    %16 = arith.addf %12, %15 : vector<2x16x8xf32>
    %cst_4 = arith.constant dense<0.000000e+00> : vector<8xf32>
    %17 = vector.multi_reduction <add>, %16, %cst_4 [0, 1] : vector<2x16x8xf32> to vector<8xf32>
    %18 = vector.shape_cast %17 : vector<8xf32> to vector<1x1x8xf32>
    %cst_5 = arith.constant 3.125000e-02 : f32
    %19 = vector.broadcast %cst_5 : f32 to vector<1x1x8xf32>
    %20 = arith.mulf %18, %19 : vector<1x1x8xf32>
    %21 = arith.mulf %16, %16 : vector<2x16x8xf32>
    %cst_6 = arith.constant dense<0.000000e+00> : vector<8xf32>
    %22 = vector.multi_reduction <add>, %21, %cst_6 [0, 1] : vector<2x16x8xf32> to vector<8xf32>
    %23 = vector.shape_cast %22 : vector<8xf32> to vector<1x1x8xf32>
    %cst_7 = arith.constant 3.125000e-02 : f32
    %24 = vector.broadcast %cst_7 : f32 to vector<1x1x8xf32>
    %25 = arith.mulf %23, %24 : vector<1x1x8xf32>
    %26 = arith.mulf %20, %20 : vector<1x1x8xf32>
    %27 = arith.subf %25, %26 : vector<1x1x8xf32>
    %cst_8 = arith.constant 0.000000e+00 : f32
    %28 = vector.broadcast %cst_8 : f32 to vector<1x1x8xf32>
    %29 = arith.maximumf %27, %28 : vector<1x1x8xf32>
    %c0_9 = arith.constant 0 : index
    %c0_10 = arith.constant 0 : index
    %30 = vector.load %arg3[%c0_9, %c0_10] : memref<1x8xf32, #tpu.memory_space<vmem>>, vector<1x8xf32>
    %31 = vector.shape_cast %30 : vector<1x8xf32> to vector<1x1x8xf32>
    %cst_11 = arith.constant 9.99999974E-6 : f32
    %32 = vector.broadcast %cst_11 : f32 to vector<1x1x8xf32>
    %33 = arith.addf %29, %32 : vector<1x1x8xf32>
    %34 = math.rsqrt %33 : vector<1x1x8xf32>
    %35 = arith.mulf %31, %34 : vector<1x1x8xf32>
    %c0_12 = arith.constant 0 : index
    %c0_13 = arith.constant 0 : index
    %36 = vector.load %arg4[%c0_12, %c0_13] : memref<1x8xf32, #tpu.memory_space<vmem>>, vector<1x8xf32>
    %37 = vector.shape_cast %36 : vector<1x8xf32> to vector<1x1x8xf32>
    %38 = arith.mulf %20, %35 : vector<1x1x8xf32>
    %39 = arith.subf %37, %38 : vector<1x1x8xf32>
    %40 = vector.broadcast %35 : vector<1x1x8xf32> to vector<2x16x8xf32>
    %41 = arith.mulf %16, %40 : vector<2x16x8xf32>
    %42 = vector.broadcast %39 : vector<1x1x8xf32> to vector<2x16x8xf32>
    %43 = arith.addf %41, %42 : vector<2x16x8xf32>
    %cst_14 = arith.constant 0.000000e+00 : f32
    %44 = vector.broadcast %cst_14 : f32 to vector<2x16x8xf32>
    %45 = arith.cmpf ogt, %43, %44 : vector<2x16x8xf32>
    %cst_15 = arith.constant 0.000000e+00 : f32
    %46 = vector.broadcast %cst_15 : f32 to vector<2x16x8xf32>
    %47 = arith.minimumf %43, %46 : vector<2x16x8xf32>
    %48 = math.exp %47 : vector<2x16x8xf32>
    %cst_16 = arith.constant 1.000000e+00 : f32
    %49 = vector.broadcast %cst_16 : f32 to vector<2x16x8xf32>
    %50 = arith.subf %48, %49 : vector<2x16x8xf32>
    %51 = arith.select %45, %43, %50 : vector<2x16x8xi1>, vector<2x16x8xf32>
    %cst_17 = arith.constant 0xFF800000 : f32
    %52 = vector.broadcast %cst_17 : f32 to vector<2x1x8xf32>
    %53 = vector.extract_strided_slice %51 {offsets = [0, 0, 0], sizes = [2, 15, 8], strides = [1, 1, 1]} : vector<2x16x8xf32> to vector<2x15x8xf32>
    %54 = tpu.concatenate %52, %53 in 1 : vector<2x1x8xf32>, vector<2x15x8xf32> -> vector<2x16x8xf32>
    %55 = arith.maximumf %54, %51 : vector<2x16x8xf32>
    %56 = vector.extract_strided_slice %55 {offsets = [0, 0, 0], sizes = [2, 1, 8], strides = [1, 1, 1]} : vector<2x16x8xf32> to vector<2x1x8xf32>
    %57 = vector.extract_strided_slice %55 {offsets = [0, 2, 0], sizes = [2, 1, 8], strides = [1, 1, 1]} : vector<2x16x8xf32> to vector<2x1x8xf32>
    %58 = vector.extract_strided_slice %55 {offsets = [0, 4, 0], sizes = [2, 1, 8], strides = [1, 1, 1]} : vector<2x16x8xf32> to vector<2x1x8xf32>
    %59 = vector.extract_strided_slice %55 {offsets = [0, 6, 0], sizes = [2, 1, 8], strides = [1, 1, 1]} : vector<2x16x8xf32> to vector<2x1x8xf32>
    %60 = vector.extract_strided_slice %55 {offsets = [0, 8, 0], sizes = [2, 1, 8], strides = [1, 1, 1]} : vector<2x16x8xf32> to vector<2x1x8xf32>
    %61 = vector.extract_strided_slice %55 {offsets = [0, 10, 0], sizes = [2, 1, 8], strides = [1, 1, 1]} : vector<2x16x8xf32> to vector<2x1x8xf32>
    %62 = vector.extract_strided_slice %55 {offsets = [0, 12, 0], sizes = [2, 1, 8], strides = [1, 1, 1]} : vector<2x16x8xf32> to vector<2x1x8xf32>
    %63 = vector.extract_strided_slice %55 {offsets = [0, 14, 0], sizes = [2, 1, 8], strides = [1, 1, 1]} : vector<2x16x8xf32> to vector<2x1x8xf32>
    %64 = tpu.concatenate %56, %57, %58, %59, %60, %61, %62, %63 in 1 : vector<2x1x8xf32>, vector<2x1x8xf32>, vector<2x1x8xf32>, vector<2x1x8xf32>, vector<2x1x8xf32>, vector<2x1x8xf32>, vector<2x1x8xf32>, vector<2x1x8xf32> -> vector<2x8x8xf32>
    %65 = vector.extract_strided_slice %55 {offsets = [0, 1, 0], sizes = [2, 1, 8], strides = [1, 1, 1]} : vector<2x16x8xf32> to vector<2x1x8xf32>
    %66 = vector.extract_strided_slice %55 {offsets = [0, 3, 0], sizes = [2, 1, 8], strides = [1, 1, 1]} : vector<2x16x8xf32> to vector<2x1x8xf32>
    %67 = vector.extract_strided_slice %55 {offsets = [0, 5, 0], sizes = [2, 1, 8], strides = [1, 1, 1]} : vector<2x16x8xf32> to vector<2x1x8xf32>
    %68 = vector.extract_strided_slice %55 {offsets = [0, 7, 0], sizes = [2, 1, 8], strides = [1, 1, 1]} : vector<2x16x8xf32> to vector<2x1x8xf32>
    %69 = vector.extract_strided_slice %55 {offsets = [0, 9, 0], sizes = [2, 1, 8], strides = [1, 1, 1]} : vector<2x16x8xf32> to vector<2x1x8xf32>
    %70 = vector.extract_strided_slice %55 {offsets = [0, 11, 0], sizes = [2, 1, 8], strides = [1, 1, 1]} : vector<2x16x8xf32> to vector<2x1x8xf32>
    %71 = vector.extract_strided_slice %55 {offsets = [0, 13, 0], sizes = [2, 1, 8], strides = [1, 1, 1]} : vector<2x16x8xf32> to vector<2x1x8xf32>
    %72 = vector.extract_strided_slice %55 {offsets = [0, 15, 0], sizes = [2, 1, 8], strides = [1, 1, 1]} : vector<2x16x8xf32> to vector<2x1x8xf32>
    %73 = tpu.concatenate %65, %66, %67, %68, %69, %70, %71, %72 in 1 : vector<2x1x8xf32>, vector<2x1x8xf32>, vector<2x1x8xf32>, vector<2x1x8xf32>, vector<2x1x8xf32>, vector<2x1x8xf32>, vector<2x1x8xf32>, vector<2x1x8xf32> -> vector<2x8x8xf32>
    %74 = arith.maximumf %64, %73 : vector<2x8x8xf32>
    %c0_18 = arith.constant 0 : index
    %c0_19 = arith.constant 0 : index
    %c0_20 = arith.constant 0 : index
    %75 = vector.load %arg5[%c0_18, %c0_19, %c0_20] : memref<2x8x8xf32, #tpu.memory_space<vmem>>, vector<2x8x8xf32>
    tpu.vector_store %arg5[%c0_18, %c0_19, %c0_20], %74 {strides = array<i32>} : memref<2x8x8xf32, #tpu.memory_space<vmem>>, vector<2x8x8xf32>,
    return
  }
  func.func @transform_0(%arg0: i32) -> (i32, i32, i32) {
    %c0_i32 = arith.constant 0 : i32
    %c0_i32_0 = arith.constant 0 : i32
    %c0_i32_1 = arith.constant 0 : i32
    %c0_i32_2 = arith.constant 0 : i32
    return %c0_i32, %c0_i32_0, %c0_i32_1 : i32, i32, i32
  }
  func.func @transform_1(%arg0: i32) -> (i32, i32) {
    %c0_i32 = arith.constant 0 : i32
    %c0_i32_0 = arith.constant 0 : i32
    %c0_i32_1 = arith.constant 0 : i32
    return %c0_i32, %c0_i32_0 : i32, i32
  }
  func.func @transform_2(%arg0: i32) -> (i32, i32) {
    %c0_i32 = arith.constant 0 : i32
    %c0_i32_0 = arith.constant 0 : i32
    %c0_i32_1 = arith.constant 0 : i32
    return %c0_i32, %c0_i32_0 : i32, i32
  }
  func.func @transform_3(%arg0: i32) -> (i32, i32) {
    %c0_i32 = arith.constant 0 : i32
    %c0_i32_0 = arith.constant 0 : i32
    %c0_i32_1 = arith.constant 0 : i32
    return %c0_i32, %c0_i32_0 : i32, i32
  }
  func.func @transform_4(%arg0: i32) -> (i32, i32, i32) {
    %c0_i32 = arith.constant 0 : i32
    %c0_i32_0 = arith.constant 0 : i32
    %c0_i32_1 = arith.constant 0 : i32
    %c0_i32_2 = arith.constant 0 : i32
    return %c0_i32, %c0_i32_0, %c0_i32_1 : i32, i32, i32
  }
}

</mosaic_0001>

<llo_original>
// kernel: tpu_custom_call.1
$region0: #{tpu_custom_call.1}
  #allocation0 [shape = 'u32[]', space=smem, size = 0x4, offset = 0x4, fixed_abs, tag = 'smem constant byte address 0x4 - core index']
  #allocation1 [shape = 'u32[144,128]{1,0:T(1,128)}', space=vmem, size = 0x12000, scoped, tag = 'internal scratch']
  %s0 = inlined_call_operand.vmem [shape: f32[2,16,8], index: 0, kind: input, shape index: {}]
  %s1 = inlined_call_operand.vmem [shape: bf16[8,24], index: 1, kind: input, shape index: {}]
  %s2 = inlined_call_operand.vmem [shape: f32[1,8], index: 2, kind: input, shape index: {}]
  %s3 = inlined_call_operand.vmem [shape: f32[1,8], index: 3, kind: input, shape index: {}]
  %s4 = inlined_call_operand.hbm [shape: f32[2,8,8], index: 4, kind: output, shape index: {}]
  %s5 = sld [smem:[#allocation0]]
  $region26: #{tpu_custom_call.1} parent=0
    _
  %s7 = ssub.s32 1, %s5
  %s8 = scalar_select 0, %s7, %s5
  $region1: #{tpu_custom_call.1} parent=0
    #allocation2 [shape = 'u8[8192]{0}', space=vmem, size = 0x2000, scoped, tag = 'output window, operand 0, single buffered']
    #allocation3 [shape = 's32[1]{0}', space=sflag, size = 0x4, scoped, tag = 'scoped memory for tpu_custom_call.1']
    %9 = vsyncpa [#allocation3], 0
    // Predicated region
    $region2: #{tpu_custom_call.1} parent=1 // pred_check
      _
    $region3: #{tpu_custom_call.1} parent=1 // pred_check_branch
      %11 = sbr.rel (0) target = $region5
    $region4: #{tpu_custom_call.1} parent=1 // pred_region
      _
    $region5: #{tpu_custom_call.1} parent=1 // pred_fallthru
      _
    // Predicated region
    $region6: #{tpu_custom_call.1} parent=1 // pred_check
      _
    $region7: #{tpu_custom_call.1} parent=1 // pred_check_branch
      %13 = sbr.rel (0) target = $region9
    $region8: #{tpu_custom_call.1} parent=1 // pred_region
      _
    $region9: #{tpu_custom_call.1} parent=1 // pred_fallthru
      _
    // Predicated region
    $region10: #{tpu_custom_call.1} parent=1 // pred_check
      _
    $region11: #{tpu_custom_call.1} parent=1 // pred_check_branch
      %15 = sbr.rel (0) target = $region13
    $region12: #{tpu_custom_call.1} parent=1 // pred_region
      _
    $region13: #{tpu_custom_call.1} parent=1 // pred_fallthru
      _
    // Predicated region
    $region14: #{tpu_custom_call.1} parent=1 // pred_check
      _
    $region15: #{tpu_custom_call.1} parent=1 // pred_check_branch
      %17 = sbr.rel (0) target = $region17
    $region16: #{tpu_custom_call.1} parent=1 // pred_region
      _
    $region17: #{tpu_custom_call.1} parent=1 // pred_fallthru
      _
    %v19 = vld [vmem:[%s0] sm:$0xff]
    %v20 = vld [vmem:[%s0 + $0x8] sm:$0xff]
    %v21 = vld [vmem:[%s0 + $0x10] sm:$0xff]
    %v22 = vld [vmem:[%s0 + $0x18] sm:$0xff]
    %v23 = vpack.c.bf16 %v20, %v19
    %v24 = vpack.c.bf16 %v22, %v21
    %v25 = vld [vmem:[%s1] sm:$0xf]
    %vm26 = vcmask 64512
    %v28 = vsel %vm26, %v23, 0
    %v31 = vsel %vm26, %v24, 0
    %vm33 = vcmask 1043456
    %v35 = vsel %vm33, %v25, 0
    %37 = vmatprep.subr.bf16.mxu0 0
    %38 = vmatpush1.bf16.msra.mxu0 0
    %39 = vmatprep.subr.bf16.mxu0 0
    %40 = vmatpush1.bf16.msra.mxu0 0
    %41 = vmatprep.subr.bf16.mxu0 0
    %42 = vmatpush1.bf16.msra.mxu0 0
    %43 = vmatprep.subr.bf16.mxu0 0
    %44 = vmatpush1.bf16.msra.mxu0 0
    %45 = vmatprep.subr.bf16.mxu0 0
    %46 = vmatpush1.bf16.msra.mxu0 0
    %47 = vmatprep.subr.bf16.mxu0 0
    %48 = vmatpush1.bf16.msra.mxu0 0
    %49 = vmatprep.subr.bf16.mxu0 0
    %50 = vmatpush1.bf16.msra.mxu0 0
    %51 = vmatprep.subr.bf16.mxu0 0
    %52 = vmatpush1.bf16.msra.mxu0 %v35
    %53 = vmatprep.subr.bf16.mxu0 0
    %54 = vmatpush2.bf16.msra.mxu0 0
    %55 = vmatprep.subr.bf16.mxu0 0
    %56 = vmatpush2.bf16.msra.mxu0 0
    %57 = vmatprep.subr.bf16.mxu0 0
    %58 = vmatpush2.bf16.msra.mxu0 0
    %59 = vmatprep.subr.bf16.mxu0 0
    %60 = vmatpush2.bf16.msra.mxu0 0
    %61 = vmatprep.subr.bf16.mxu0 0
    %62 = vmatpush2.bf16.msra.mxu0 0
    %63 = vmatprep.subr.bf16.mxu0 0
    %64 = vmatpush2.bf16.msra.mxu0 0
    %65 = vmatprep.subr.bf16.mxu0 0
    %66 = vmatpush2.bf16.msra.mxu0 0
    %67 = vmatprep.subr.bf16.mxu0 0
    %68 = vmatpush2.bf16.msra.mxu0 0
    %69 = vmatprep.mubr.bf16.mxu0 0
    %70 = vmatmul.mubr.bf16.gmra.mxu0 %v28
    %v71 = vpop.f32.mrf.mxu0
    %v72 = vadd.f32 0.0, %v71
    %v73 = vpop.f32.mrf.mxu0
    %v74 = vpop.f32.mrf.mxu0
    %v75 = vadd.f32 0.0, %v74
    %v76 = vpop.f32.mrf.mxu0
    %77 = vmatprep.mubr.bf16.mxu0 0
    %78 = vmatmul.mubr.bf16.gmra.mxu0 %v31
    %v79 = vpop.f32.mrf.mxu0
    %v80 = vadd.f32 0.0, %v79
    %v81 = vpop.f32.mrf.mxu0
    %v82 = vpop.f32.mrf.mxu0
    %v83 = vadd.f32 0.0, %v82
    %v84 = vpop.f32.mrf.mxu0
    %85 = vdwg.mxu0
    %v88 = vrot.slane %v75, 7
    %v89 = vrot.slane %v83, 7
    %vm94 = vcmask 1040384
    %v95 = vrot.slane %v72, 7
    %v96 = vsel %vm94, %v95, %v88
    %v97 = vrot.slane %v80, 7
    %v98 = vsel %vm94, %v97, %v89
    %v103 = vsel %vm94, %v88, %v95
    %v104 = vsel %vm94, %v89, %v97
    %105 = vrot.lane.b32.xlu0 %v72, 120
    %v106 = vpop.permute.xlu0 %105
    %107 = vrot.lane.b32.xlu0 %v75, 120
    %v108 = vpop.permute.xlu0 %107
    %109 = vrot.lane.b32.xlu0 %v80, 120
    %v110 = vpop.permute.xlu0 %109
    %111 = vrot.lane.b32.xlu0 %v83, 120
    %v112 = vpop.permute.xlu0 %111
    %v117 = vadd.f32 %v103, %v106
    %v118 = vadd.f32 %v96, %v108
    %v119 = vadd.f32 %v104, %v110
    %v120 = vadd.f32 %v98, %v112
    %vm121 = vcmask 1046528
    %v122 = vrot.slane %v72, 1
    %v123 = vrot.slane %v75, 1
    %v124 = vsel %vm121, %v122, %v123
    %v125 = vrot.slane %v80, 1
    %v126 = vrot.slane %v83, 1
    %v127 = vsel %vm121, %v125, %v126
    %v132 = vsel %vm121, %v123, %v122
    %v133 = vsel %vm121, %v126, %v125
    %136 = vrot.lane.b32.xlu0 %v124, 112
    %v137 = vpop.permute.xlu0 %136
    %138 = vrot.lane.b32.xlu0 %v132, 112
    %v139 = vpop.permute.xlu0 %138
    %140 = vrot.lane.b32.xlu0 %v127, 112
    %v141 = vpop.permute.xlu0 %140
    %142 = vrot.lane.b32.xlu0 %v133, 112
    %v143 = vpop.permute.xlu0 %142
    %v148 = vadd.f32 %v117, %v137
    %v149 = vadd.f32 %v118, %v139
    %v150 = vadd.f32 %v119, %v141
    %v151 = vadd.f32 %v120, %v143
    %v152 = vsel %vm26, %v148, 0.0
    %v153 = vsel %vm26, %v149, 0.0
    %v154 = vadd.f32 %v152, %v153
    %v155 = vsel %vm26, %v150, 0.0
    %v156 = vadd.f32 %v154, %v155
    %v157 = vsel %vm26, %v151, 0.0
    %v158 = vadd.f32 %v156, %v157
    %v159 = vrot.slane %v158, 4
    %v160 = vadd.f32 %v158, %v159
    %v161 = vrot.slane %v160, 2
    %v162 = vadd.f32 %v160, %v161
    %v163 = vrot.slane %v162, 1
    %v164 = vadd.f32 %v162, %v163
    %v165 = vmul.f32 %v164, 0.03125
    %v166 = vmul.f32 %v148, %v148
    %v167 = vmul.f32 %v149, %v149
    %v168 = vmul.f32 %v150, %v150
    %v169 = vmul.f32 %v151, %v151
    %v170 = vsel %vm26, %v166, 0.0
    %v171 = vsel %vm26, %v167, 0.0
    %v172 = vadd.f32 %v170, %v171
    %v173 = vsel %vm26, %v168, 0.0
    %v174 = vadd.f32 %v172, %v173
    %v175 = vsel %vm26, %v169, 0.0
    %v176 = vadd.f32 %v174, %v175
    %v177 = vrot.slane %v176, 4
    %v178 = vadd.f32 %v176, %v177
    %v179 = vrot.slane %v178, 2
    %v180 = vadd.f32 %v178, %v179
    %v181 = vrot.slane %v180, 1
    %v182 = vadd.f32 %v180, %v181
    %v183 = vmul.f32 %v182, 0.03125
    %v184 = vmul.f32 %v165, %v165
    %v185 = vsub.f32 %v183, %v184
    %v186 = vmax.f32 %v185, 0.0
    %v187 = vld [vmem:[%s2] sm:$0x1]
    %v188 = vadd.f32 %v186, 1e-05
    %v189 = vrsqrt.pop %v188
    %v190 = vmul.f32 %v187, %v189
    %v191 = vld [vmem:[%s3] sm:$0x1]
    %v192 = vmul.f32 %v165, %v190
    %v193 = vsub.f32 %v191, %v192
    %v195 = vlaneseq
    %v196 = vshrl.u32 %v195, 7
    %v197 = vsub.s32 0, %v196
    %v198 = vrot.slane %v190, %v197
    %v200 = vmul.f32 %v148, %v198
    %v201 = vmul.f32 %v149, %v198
    %v202 = vmul.f32 %v150, %v198
    %v203 = vmul.f32 %v151, %v198
    %v205 = vlaneseq
    %v206 = vshrl.u32 %v205, 7
    %v207 = vsub.s32 0, %v206
    %v208 = vrot.slane %v193, %v207
    %v210 = vadd.f32 %v200, %v208
    %v211 = vadd.f32 %v201, %v208
    %v212 = vadd.f32 %v202, %v208
    %v213 = vadd.f32 %v203, %v208
    %vm214 = vcmp.gt.f32.partialorder %v210, 0.0
    %vm215 = vcmp.gt.f32.partialorder %v211, 0.0
    %vm216 = vcmp.gt.f32.partialorder %v212, 0.0
    %vm217 = vcmp.gt.f32.partialorder %v213, 0.0
    %v218 = vmin.f32 %v210, 0.0
    %v219 = vmin.f32 %v211, 0.0
    %v220 = vmin.f32 %v212, 0.0
    %v221 = vmin.f32 %v213, 0.0
    %v222 = vmul.f32 %v218, 1.442695
    %v223 = vpow.pop %v222
    %v224 = vmul.f32 %v219, 1.442695
    %v225 = vpow.pop %v224
    %v226 = vmul.f32 %v220, 1.442695
    %v227 = vpow.pop %v226
    %v228 = vmul.f32 %v221, 1.442695
    %v229 = vpow.pop %v228
    %v230 = vsub.f32 %v223, 1.0
    %v231 = vsub.f32 %v225, 1.0
    %v232 = vsub.f32 %v227, 1.0
    %v233 = vsub.f32 %v229, 1.0
    %v234 = vsel %vm214, %v210, %v230
    %v235 = vsel %vm215, %v211, %v231
    %v236 = vsel %vm216, %v212, %v232
    %v237 = vsel %vm217, %v213, %v233
    %v242 = vrot.slane %v234, 7
    %v243 = vrot.slane %v235, 7
    %v244 = vsel %vm94, %v242, %v243
    %v245 = vrot.slane %v236, 7
    %v246 = vrot.slane %v237, 7
    %v247 = vsel %vm94, %v245, %v246
    %v252 = vsel %vm94, -inf, %v242
    %v253 = vsel %vm94, -inf, %v245
    %v254 = vmax.f32 %v252, %v234
    %v255 = vmax.f32 %v244, %v235
    %v256 = vmax.f32 %v253, %v236
    %v257 = vmax.f32 %v247, %v237
    %v260 = vrot.slane %v254, 1
    %v261 = vrot.slane %v256, 1
    %v264 = vrot.slane %v254, 2
    %v265 = vrot.slane %v256, 2
    %v268 = vrot.slane %v254, 3
    %v269 = vrot.slane %v256, 3
    %v274 = vrot.slane %v255, 4
    %v275 = vrot.slane %v257, 4
    %v278 = vrot.slane %v255, 5
    %v279 = vrot.slane %v257, 5
    %v282 = vrot.slane %v255, 6
    %v283 = vrot.slane %v257, 6
    %v286 = vrot.slane %v255, 7
    %v287 = vrot.slane %v257, 7
    %v290 = vsel %vm94, %v254, %v260
    %v291 = vsel %vm94, %v256, %v261
    %vm292 = vcmask 1041408
    %v293 = vsel %vm292, %v290, %v264
    %v294 = vsel %vm292, %v291, %v265
    %vm295 = vcmask 1042432
    %v296 = vsel %vm295, %v293, %v268
    %v297 = vsel %vm295, %v294, %v269
    %v298 = vsel %vm33, %v296, %v274
    %v299 = vsel %vm33, %v297, %v275
    %vm300 = vcmask 1044480
    %v301 = vsel %vm300, %v298, %v278
    %v302 = vsel %vm300, %v299, %v279
    %vm303 = vcmask 1045504
    %v304 = vsel %vm303, %v301, %v282
    %v305 = vsel %vm303, %v302, %v283
    %v306 = vsel %vm121, %v304, %v286
    %v307 = vsel %vm121, %v305, %v287
    %v308 = vrot.slane %v254, 4
    %v309 = vrot.slane %v256, 4
    %v312 = vsel %vm94, %v260, %v264
    %v313 = vsel %vm94, %v261, %v265
    %v314 = vsel %vm292, %v312, %v268
    %v315 = vsel %vm292, %v313, %v269
    %v316 = vsel %vm295, %v314, %v308
    %v317 = vsel %vm295, %v315, %v309
    %v318 = vsel %vm33, %v316, %v278
    %v319 = vsel %vm33, %v317, %v279
    %v320 = vsel %vm300, %v318, %v282
    %v321 = vsel %vm300, %v319, %v283
    %v322 = vsel %vm303, %v320, %v286
    %v323 = vsel %vm303, %v321, %v287
    %v324 = vsel %vm121, %v322, %v255
    %v325 = vsel %vm121, %v323, %v257
    %v326 = vmax.f32 %v306, %v324
    %v327 = vmax.f32 %v307, %v325
    %328 = vst.msk [vmem:[#allocation2] sm:$0xff] %vm26, %v326
    %329 = vst.msk [vmem:[#allocation2 + $0x8] sm:$0xff] %vm26, %v327
    // Predicated region
    $region18: #{tpu_custom_call.1} parent=1 // pred_check
      _
    $region19: #{tpu_custom_call.1} parent=1 // pred_check_branch
      %331 = sbr.rel (0) target = $region21
    $region20: #{tpu_custom_call.1} parent=1 // pred_region
      %s333 = ssub.s32 256, 256
      %334 = vsyncadd [#allocation3], %s333
      %s335 = sshll.u32 [#allocation2], 4
      %s336 = int_to_ptr.vmem [resolvable:$true] %s335
      %341 = dma.vmem_to_hbm [thread:$0]  %s336, 256, %s4, [#allocation3], 128, 128, 8
    $region21: #{tpu_custom_call.1} parent=1 // pred_fallthru
      _
    // Predicated region
    $region22: #{tpu_custom_call.1} parent=1 // pred_check
      _
    $region23: #{tpu_custom_call.1} parent=1 // pred_check_branch
      %343 = sbr.rel (0) target = $region25
    $region24: #{tpu_custom_call.1} parent=1 // pred_region
      %344 = dma.done [#allocation3], 256
    $region25: #{tpu_custom_call.1} parent=1 // pred_fallthru
      _
    %345 = vsyncpa [#allocation3], 1

</llo_original>
